<compile_context>
chip_gen: v5e
topology: v5e:2x2
jax: 0.10.0
libtpu: 0.0.40
codegen_flags: <defaults>
</compile_context>

<pallas_src>
import jax
import jax.numpy as jnp
from jax.experimental import pallas as pl
from jax.experimental.pallas import tpu as pltpu

H_IN = 1024   # fc1 in_features
H1 = 64       # fc1 out_features / bn1 features
H2 = 64       # fc2 out_features / bn2 features
EPS = 1e-5


def _round_up(n, m):
    return ((n + m - 1) // m) * m


def _bn_train(h, gamma, beta):
    # BatchNorm1d training mode: per-feature batch mean, biased variance.
    mean = jnp.mean(h, axis=0, keepdims=True)
    var = jnp.mean(jnp.square(h - mean), axis=0, keepdims=True)
    return (h - mean) * jax.lax.rsqrt(var + EPS) * gamma + beta


def simnet_kernel(x_ref,
                  w1_ref, b1_ref, g1_ref, be1_ref,
                  w2_ref, b2_ref, g2_ref, be2_ref,
                  w3_ref, b3_ref,
                  out_ref,
                  h_scr):
    B = out_ref.shape[0]          # true batch size (static)
    TILE = x_ref.shape[1]         # rows per pipelined step (static)
    B_pad = h_scr.shape[0] // 2   # per-branch scratch plane size (static)

    b = pl.program_id(0)          # branch index (0 / 1)
    i = pl.program_id(1)          # batch-tile index within the branch

    # ---- pipelined stage: fc1 + ReLU on this (TILE, 1024) slab --------------
    h = jnp.dot(x_ref[0], w1_ref[...],
                preferred_element_type=jnp.float32) + b1_ref[...]
    row0 = b * B_pad + i * TILE
    if TILE % 8 == 0 and B_pad % 8 == 0:
        row0 = pl.multiple_of(row0, 8)
    h_scr[pl.ds(row0, TILE), :] = jnp.maximum(h, 0.0)

    # ---- epilogue: runs once, after both branches' fc1 outputs are in VMEM --
    last = ((b == pl.num_programs(0) - 1) &
            (i == pl.num_programs(1) - 1))

    @pl.when(last)
    def _():
        g1 = g1_ref[...]
        be1 = be1_ref[...]
        # Two sequential nn.BatchNorm1d(training) calls: shared affine weights,
        # independent per-branch batch statistics.  Rows >= B of each scratch
        # plane are padding from a ragged last tile and are never read.
        x1 = _bn_train(h_scr[0:B, :], g1, be1)
        x2 = _bn_train(h_scr[B_pad:B_pad + B, :], g1, be1)

        # fc2 over cat([x1, x1*x2, x2], dim=1) as a single K=192 MXU pass.
        xcat = jnp.concatenate([x1, x1 * x2, x2], axis=1)          # (B, 192)
        h2 = jnp.dot(xcat, w2_ref[...],
                     preferred_element_type=jnp.float32) + b2_ref[...]
        h2 = jnp.maximum(h2, 0.0)                                   # relu
        h2 = _bn_train(h2, g2_ref[...], be2_ref[...])               # bn2

        # fc3 (N=1): VPU multiply + lane reduction; w3_ref is (1, 64).
        logits = jnp.sum(h2 * w3_ref[...], axis=-1, keepdims=True) + b3_ref[...]
        out_ref[...] = jax.nn.sigmoid(logits)                       # sigmoid


def _full_spec(a):
    zeros = (0,) * a.ndim
    return pl.BlockSpec(a.shape, lambda b, i: zeros)


def similarity_net(input_features, params, *, tile=512):
    """input_features: float32[2, B, 1024]; returns float32[B, 1]."""
    two, B, h_in = input_features.shape
    assert two == 2 and h_in == H_IN

    # Batch tile: full branch if it fits comfortably, else `tile` rows/step.
    TILE = B if B <= tile else tile
    n_tiles = pl.cdiv(B, TILE)
    # Per-branch scratch plane rounded to a sublane multiple so branch 1's
    # plane starts 8-aligned (no relayout copies in the epilogue).
    B_pad = _round_up(n_tiles * TILE, 8)

    w3_row = params["w3"].reshape(1, H2)   # (64,1) -> (1,64) for the VPU fc3

    args = (input_features,
            params["w1"], params["b1"], params["g1"], params["be1"],
            params["w2"], params["b2"], params["g2"], params["be2"],
            w3_row, params["b3"])

    in_specs = [pl.BlockSpec((1, TILE, H_IN), lambda b, i: (b, i, 0))]
    in_specs += [_full_spec(a) for a in args[1:]]

    # VMEM budget: double-buffered x slab + params + fc1 scratch + epilogue
    # temporaries, clamped to this generation's physical VMEM minus headroom.
    param_bytes = sum(int(a.size) * 4 for a in args[1:])
    est = (2 * TILE * H_IN * 4             # pipelined x slab (double-buffered)
           + 2 * param_bytes               # weights / affine params
           + 2 * B_pad * H1 * 4            # fc1 scratch
           + 16 * B * H1 * 4               # epilogue temporaries (generous)
           + (4 << 20))                    # headroom
    try:
        vmem_cap = int(pltpu.get_tpu_info().vmem_capacity_bytes)
    except Exception:
        vmem_cap = 64 << 20                # v7x per-TensorCore VMEM (smallest)
    vmem_limit = int(min(max(est, 32 << 20), vmem_cap - (8 << 20)))

    cost = pl.CostEstimate(
        flops=2 * 2 * B * H_IN * H1 + 2 * B * 3 * H1 * H2 + 2 * B * H2,
        transcendentals=B + 3 * H1,
        bytes_accessed=2 * B * H_IN * 4 + param_bytes + B * 4,
    )

    return pl.pallas_call(
        simnet_kernel,
        out_shape=jax.ShapeDtypeStruct((B, 1), jnp.float32),
        grid_spec=pltpu.PrefetchScalarGridSpec(
            num_scalar_prefetch=0,
            grid=(2, n_tiles),
            in_specs=in_specs,
            out_specs=pl.BlockSpec((B, 1), lambda b, i: (0, 0)),
            scratch_shapes=[pltpu.VMEM((2 * B_pad, H1), jnp.float32)],
        ),
        # Both axes 'arbitrary': the epilogue at the final grid point consumes
        # every step's scratch writes, so all steps must run sequentially on
        # one core.  TODO(synk): v7x dual-TC split of the branch axis.
        compiler_params=pltpu.CompilerParams(
            dimension_semantics=("arbitrary", "arbitrary"),
            vmem_limit_bytes=vmem_limit),
        cost_estimate=cost,
    )(*args)


def init_params(key):
    ks = jax.random.split(key, 6)
    # Biases / affine params kept 2D (1, F) so they sit cleanly in VMEM.
    return {
        "w1": jax.random.normal(ks[0], (H_IN, H1), jnp.float32) * 0.02,
        "b1": jax.random.normal(ks[1], (1, H1), jnp.float32) * 0.01,
        "g1": jnp.ones((1, H1), jnp.float32) * 1.1,
        "be1": jnp.full((1, H1), 0.05, jnp.float32),
        "w2": jax.random.normal(ks[2], (3 * H1, H2), jnp.float32) * 0.05,
        "b2": jax.random.normal(ks[3], (1, H2), jnp.float32) * 0.01,
        "g2": jnp.ones((1, H2), jnp.float32) * 0.9,
        "be2": jnp.full((1, H2), -0.05, jnp.float32),
        "w3": jax.random.normal(ks[4], (H2, 1), jnp.float32) * 0.1,
        "b3": jax.random.normal(ks[5], (1, 1), jnp.float32) * 0.01,
    }


def reference_forward(input_features, params):
    # Pure-JAX reference (same math as the PyTorch module in training mode).
    def branch(x):
        h = jnp.maximum(x @ params["w1"] + params["b1"], 0.0)
        m = jnp.mean(h, axis=0, keepdims=True)
        v = jnp.mean((h - m) ** 2, axis=0, keepdims=True)
        return ((h - m) / jnp.sqrt(v + EPS)) * params["g1"] + params["be1"]

    x1 = branch(input_features[0])
    x2 = branch(input_features[1])
    x = jnp.concatenate([x1, x1 * x2, x2], axis=1)
    h = jnp.maximum(x @ params["w2"] + params["b2"], 0.0)
    m = jnp.mean(h, axis=0, keepdims=True)
    v = jnp.mean((h - m) ** 2, axis=0, keepdims=True)
    h = ((h - m) / jnp.sqrt(v + EPS)) * params["g2"] + params["be2"]
    return jax.nn.sigmoid(h @ params["w3"] + params["b3"])


if __name__ == "__main__":
    key = jax.random.PRNGKey(0)
    k_in, k_p = jax.random.split(key)

    B = 8
    input_features = jax.random.normal(k_in, (2, B, H_IN), jnp.float32)
    params = init_params(k_p)

    out = jax.block_until_ready(similarity_net(input_features, params))
    ref = reference_forward(input_features, params)

    assert out.shape == (B, 1)
    assert jnp.allclose(out, ref, atol=1e-5, rtol=1e-5), (out, ref)

    print("KERNEL_OK")
</pallas_src>

<mosaic_0001>
module attributes {stable_mosaic.version = 11 : i64} {
  func.func @simnet_kernel(%arg0: i32, %arg1: i32, %arg2: memref<1x8x1024xf32, #tpu.memory_space<vmem>>, %arg3: memref<1024x64xf32, #tpu.memory_space<vmem>>, %arg4: memref<1x64xf32, #tpu.memory_space<vmem>>, %arg5: memref<1x64xf32, #tpu.memory_space<vmem>>, %arg6: memref<1x64xf32, #tpu.memory_space<vmem>>, %arg7: memref<192x64xf32, #tpu.memory_space<vmem>>, %arg8: memref<1x64xf32, #tpu.memory_space<vmem>>, %arg9: memref<1x64xf32, #tpu.memory_space<vmem>>, %arg10: memref<1x64xf32, #tpu.memory_space<vmem>>, %arg11: memref<1x64xf32, #tpu.memory_space<vmem>>, %arg12: memref<1x1xf32, #tpu.memory_space<vmem>>, %arg13: memref<8x1xf32, #tpu.memory_space<vmem>>, %arg14: memref<16x64xf32, #tpu.memory_space<vmem>>) attributes {dimension_semantics = [#tpu.dimension_semantics<arbitrary>, #tpu.dimension_semantics<arbitrary>], iteration_bounds = array<i64: 2, 1>, scalar_prefetch = 0 : i64, scratch_operands = 1 : i64, tpu.core_type = #tpu.core_type<tc>, window_params = [{transform_indices = @transform_0, window_bounds = array<i64: 1, 8, 1024>}, {pipeline_mode = #tpu.pipeline_mode<synchronous>, transform_indices = @transform_1, window_bounds = array<i64: 1024, 64>}, {pipeline_mode = #tpu.pipeline_mode<synchronous>, transform_indices = @transform_2, window_bounds = array<i64: 1, 64>}, {pipeline_mode = #tpu.pipeline_mode<synchronous>, transform_indices = @transform_3, window_bounds = array<i64: 1, 64>}, {pipeline_mode = #tpu.pipeline_mode<synchronous>, transform_indices = @transform_4, window_bounds = array<i64: 1, 64>}, {pipeline_mode = #tpu.pipeline_mode<synchronous>, transform_indices = @transform_5, window_bounds = array<i64: 192, 64>}, {pipeline_mode = #tpu.pipeline_mode<synchronous>, transform_indices = @transform_6, window_bounds = array<i64: 1, 64>}, {pipeline_mode = #tpu.pipeline_mode<synchronous>, transform_indices = @transform_7, window_bounds = array<i64: 1, 64>}, {pipeline_mode = #tpu.pipeline_mode<synchronous>, transform_indices = @transform_8, window_bounds = array<i64: 1, 64>}, {pipeline_mode = #tpu.pipeline_mode<synchronous>, transform_indices = @transform_9, window_bounds = array<i64: 1, 64>}, {pipeline_mode = #tpu.pipeline_mode<synchronous>, transform_indices = @transform_10, window_bounds = array<i64: 1, 1>}, {pipeline_mode = #tpu.pipeline_mode<synchronous>, transform_indices = @transform_11, window_bounds = array<i64: 8, 1>}]} {
    %c0 = arith.constant 0 : index
    %c0_0 = arith.constant 0 : index
    %c0_1 = arith.constant 0 : index
    %0 = vector.load %arg2[%c0, %c0_0, %c0_1] : memref<1x8x1024xf32, #tpu.memory_space<vmem>>, vector<1x8x1024xf32>
    %1 = vector.shape_cast %0 : vector<1x8x1024xf32> to vector<8x1024xf32>
    %c0_2 = arith.constant 0 : index
    %c0_3 = arith.constant 0 : index
    %2 = vector.load %arg3[%c0_2, %c0_3] : memref<1024x64xf32, #tpu.memory_space<vmem>>, vector<1024x64xf32>
    %cst = arith.constant dense<0.000000e+00> : vector<8x64xf32>
    %3 = tpu.matmul %1, %2, %cst {dimension_numbers = #tpu.dot_dimension_numbers<[1], [0], [0], [1], [0, 0, 1, 1], [], []>} : vector<8x1024xf32>, vector<1024x64xf32>, vector<8x64xf32> -> vector<8x64xf32>
    %c0_4 = arith.constant 0 : index
    %c0_5 = arith.constant 0 : index
    %4 = vector.load %arg4[%c0_4, %c0_5] : memref<1x64xf32, #tpu.memory_space<vmem>>, vector<1x64xf32>
    %5 = vector.broadcast %4 : vector<1x64xf32> to vector<8x64xf32>
    %6 = arith.addf %3, %5 : vector<8x64xf32>
    %c8_i32 = arith.constant 8 : i32
    %7 = arith.muli %arg0, %c8_i32 : i32
    %c8_i32_6 = arith.constant 8 : i32
    %8 = arith.muli %arg1, %c8_i32_6 : i32
    %9 = arith.addi %7, %8 : i32
    %10 = tpu.assume_multiple %9, 8 : i32
    %cst_7 = arith.constant 0.000000e+00 : f32
    %11 = vector.broadcast %cst_7 : f32 to vector<8x64xf32>
    %12 = arith.maximumf %6, %11 : vector<8x64xf32>
    %13 = arith.index_cast %10 : i32 to index
    %c0_8 = arith.constant 0 : index
    %14 = vector.load %arg14[%13, %c0_8] : memref<16x64xf32, #tpu.memory_space<vmem>>, vector<8x64xf32>
    tpu.vector_store %arg14[%13, %c0_8], %12 {strides = array<i32>} : memref<16x64xf32, #tpu.memory_space<vmem>>, vector<8x64xf32>,
    %c1_i32 = arith.constant 1 : i32
    %15 = arith.cmpi eq, %arg0, %c1_i32 : i32
    %c0_i32 = arith.constant 0 : i32
    %16 = arith.cmpi eq, %arg1, %c0_i32 : i32
    %17 = arith.andi %15, %16 : i1
    %18 = arith.extui %17 : i1 to i32
    %c0_i32_9 = arith.constant 0 : i32
    %19 = arith.cmpi ne, %18, %c0_i32_9 : i32
    scf.if %19 {
      %c0_10 = arith.constant 0 : index
      %c0_11 = arith.constant 0 : index
      %20 = vector.load %arg5[%c0_10, %c0_11] : memref<1x64xf32, #tpu.memory_space<vmem>>, vector<1x64xf32>
      %c0_12 = arith.constant 0 : index
      %c0_13 = arith.constant 0 : index
      %21 = vector.load %arg6[%c0_12, %c0_13] : memref<1x64xf32, #tpu.memory_space<vmem>>, vector<1x64xf32>
      %c0_14 = arith.constant 0 : index
      %c0_15 = arith.constant 0 : index
      %22 = vector.load %arg14[%c0_14, %c0_15] : memref<16x64xf32, #tpu.memory_space<vmem>>, vector<8x64xf32>
      %cst_16 = arith.constant dense<0.000000e+00> : vector<64xf32>
      %23 = vector.multi_reduction <add>, %22, %cst_16 [0] : vector<8x64xf32> to vector<64xf32>
      %24 = vector.shape_cast %23 : vector<64xf32> to vector<1x64xf32>
      %cst_17 = arith.constant 8.000000e+00 : f32
      %25 = vector.broadcast %cst_17 : f32 to vector<1x64xf32>
      %26 = arith.divf %24, %25 : vector<1x64xf32>
      %27 = vector.broadcast %26 : vector<1x64xf32> to vector<8x64xf32>
      %28 = arith.subf %22, %27 : vector<8x64xf32>
      %29 = arith.mulf %28, %28 : vector<8x64xf32>
      %cst_18 = arith.constant dense<0.000000e+00> : vector<64xf32>
      %30 = vector.multi_reduction <add>, %29, %cst_18 [0] : vector<8x64xf32> to vector<64xf32>
      %31 = vector.shape_cast %30 : vector<64xf32> to vector<1x64xf32>
      %cst_19 = arith.constant 8.000000e+00 : f32
      %32 = vector.broadcast %cst_19 : f32 to vector<1x64xf32>
      %33 = arith.divf %31, %32 : vector<1x64xf32>
      %34 = vector.broadcast %26 : vector<1x64xf32> to vector<8x64xf32>
      %35 = arith.subf %22, %34 : vector<8x64xf32>
      %cst_20 = arith.constant 9.99999974E-6 : f32
      %36 = vector.broadcast %cst_20 : f32 to vector<1x64xf32>
      %37 = arith.addf %33, %36 : vector<1x64xf32>
      %38 = math.rsqrt %37 : vector<1x64xf32>
      %39 = vector.broadcast %38 : vector<1x64xf32> to vector<8x64xf32>
      %40 = arith.mulf %35, %39 : vector<8x64xf32>
      %41 = vector.broadcast %20 : vector<1x64xf32> to vector<8x64xf32>
      %42 = arith.mulf %40, %41 : vector<8x64xf32>
      %43 = vector.broadcast %21 : vector<1x64xf32> to vector<8x64xf32>
      %44 = arith.addf %42, %43 : vector<8x64xf32>
      %c8 = arith.constant 8 : index
      %c0_21 = arith.constant 0 : index
      %45 = vector.load %arg14[%c8, %c0_21] : memref<16x64xf32, #tpu.memory_space<vmem>>, vector<8x64xf32>
      %cst_22 = arith.constant dense<0.000000e+00> : vector<64xf32>
      %46 = vector.multi_reduction <add>, %45, %cst_22 [0] : vector<8x64xf32> to vector<64xf32>
      %47 = vector.shape_cast %46 : vector<64xf32> to vector<1x64xf32>
      %cst_23 = arith.constant 8.000000e+00 : f32
      %48 = vector.broadcast %cst_23 : f32 to vector<1x64xf32>
      %49 = arith.divf %47, %48 : vector<1x64xf32>
      %50 = vector.broadcast %49 : vector<1x64xf32> to vector<8x64xf32>
      %51 = arith.subf %45, %50 : vector<8x64xf32>
      %52 = arith.mulf %51, %51 : vector<8x64xf32>
      %cst_24 = arith.constant dense<0.000000e+00> : vector<64xf32>
      %53 = vector.multi_reduction <add>, %52, %cst_24 [0] : vector<8x64xf32> to vector<64xf32>
      %54 = vector.shape_cast %53 : vector<64xf32> to vector<1x64xf32>
      %cst_25 = arith.constant 8.000000e+00 : f32
      %55 = vector.broadcast %cst_25 : f32 to vector<1x64xf32>
      %56 = arith.divf %54, %55 : vector<1x64xf32>
      %57 = vector.broadcast %49 : vector<1x64xf32> to vector<8x64xf32>
      %58 = arith.subf %45, %57 : vector<8x64xf32>
      %cst_26 = arith.constant 9.99999974E-6 : f32
      %59 = vector.broadcast %cst_26 : f32 to vector<1x64xf32>
      %60 = arith.addf %56, %59 : vector<1x64xf32>
      %61 = math.rsqrt %60 : vector<1x64xf32>
      %62 = vector.broadcast %61 : vector<1x64xf32> to vector<8x64xf32>
      %63 = arith.mulf %58, %62 : vector<8x64xf32>
      %64 = vector.broadcast %20 : vector<1x64xf32> to vector<8x64xf32>
      %65 = arith.mulf %63, %64 : vector<8x64xf32>
      %66 = vector.broadcast %21 : vector<1x64xf32> to vector<8x64xf32>
      %67 = arith.addf %65, %66 : vector<8x64xf32>
      %68 = arith.mulf %44, %67 : vector<8x64xf32>
      %69 = tpu.concatenate %44, %68, %67 in 1 : vector<8x64xf32>, vector<8x64xf32>, vector<8x64xf32> -> vector<8x192xf32>
      %c0_27 = arith.constant 0 : index
      %c0_28 = arith.constant 0 : index
      %70 = vector.load %arg7[%c0_27, %c0_28] : memref<192x64xf32, #tpu.memory_space<vmem>>, vector<192x64xf32>
      %cst_29 = arith.constant dense<0.000000e+00> : vector<8x64xf32>
      %71 = tpu.matmul %69, %70, %cst_29 {dimension_numbers = #tpu.dot_dimension_numbers<[1], [0], [0], [1], [0, 0, 1, 1], [], []>} : vector<8x192xf32>, vector<192x64xf32>, vector<8x64xf32> -> vector<8x64xf32>
      %c0_30 = arith.constant 0 : index
      %c0_31 = arith.constant 0 : index
      %72 = vector.load %arg8[%c0_30, %c0_31] : memref<1x64xf32, #tpu.memory_space<vmem>>, vector<1x64xf32>
      %73 = vector.broadcast %72 : vector<1x64xf32> to vector<8x64xf32>
      %74 = arith.addf %71, %73 : vector<8x64xf32>
      %cst_32 = arith.constant 0.000000e+00 : f32
      %75 = vector.broadcast %cst_32 : f32 to vector<8x64xf32>
      %76 = arith.maximumf %74, %75 : vector<8x64xf32>
      %c0_33 = arith.constant 0 : index
      %c0_34 = arith.constant 0 : index
      %77 = vector.load %arg9[%c0_33, %c0_34] : memref<1x64xf32, #tpu.memory_space<vmem>>, vector<1x64xf32>
      %c0_35 = arith.constant 0 : index
      %c0_36 = arith.constant 0 : index
      %78 = vector.load %arg10[%c0_35, %c0_36] : memref<1x64xf32, #tpu.memory_space<vmem>>, vector<1x64xf32>
      %cst_37 = arith.constant dense<0.000000e+00> : vector<64xf32>
      %79 = vector.multi_reduction <add>, %76, %cst_37 [0] : vector<8x64xf32> to vector<64xf32>
      %80 = vector.shape_cast %79 : vector<64xf32> to vector<1x64xf32>
      %cst_38 = arith.constant 8.000000e+00 : f32
      %81 = vector.broadcast %cst_38 : f32 to vector<1x64xf32>
      %82 = arith.divf %80, %81 : vector<1x64xf32>
      %83 = vector.broadcast %82 : vector<1x64xf32> to vector<8x64xf32>
      %84 = arith.subf %76, %83 : vector<8x64xf32>
      %85 = arith.mulf %84, %84 : vector<8x64xf32>
      %cst_39 = arith.constant dense<0.000000e+00> : vector<64xf32>
      %86 = vector.multi_reduction <add>, %85, %cst_39 [0] : vector<8x64xf32> to vector<64xf32>
      %87 = vector.shape_cast %86 : vector<64xf32> to vector<1x64xf32>
      %cst_40 = arith.constant 8.000000e+00 : f32
      %88 = vector.broadcast %cst_40 : f32 to vector<1x64xf32>
      %89 = arith.divf %87, %88 : vector<1x64xf32>
      %90 = vector.broadcast %82 : vector<1x64xf32> to vector<8x64xf32>
      %91 = arith.subf %76, %90 : vector<8x64xf32>
      %cst_41 = arith.constant 9.99999974E-6 : f32
      %92 = vector.broadcast %cst_41 : f32 to vector<1x64xf32>
      %93 = arith.addf %89, %92 : vector<1x64xf32>
      %94 = math.rsqrt %93 : vector<1x64xf32>
      %95 = vector.broadcast %94 : vector<1x64xf32> to vector<8x64xf32>
      %96 = arith.mulf %91, %95 : vector<8x64xf32>
      %97 = vector.broadcast %77 : vector<1x64xf32> to vector<8x64xf32>
      %98 = arith.mulf %96, %97 : vector<8x64xf32>
      %99 = vector.broadcast %78 : vector<1x64xf32> to vector<8x64xf32>
      %100 = arith.addf %98, %99 : vector<8x64xf32>
      %c0_42 = arith.constant 0 : index
      %c0_43 = arith.constant 0 : index
      %101 = vector.load %arg11[%c0_42, %c0_43] : memref<1x64xf32, #tpu.memory_space<vmem>>, vector<1x64xf32>
      %102 = vector.broadcast %101 : vector<1x64xf32> to vector<8x64xf32>
      %103 = arith.mulf %100, %102 : vector<8x64xf32>
      %cst_44 = arith.constant dense<0.000000e+00> : vector<8xf32>
      %104 = vector.multi_reduction <add>, %103, %cst_44 [1] : vector<8x64xf32> to vector<8xf32>
      %105 = vector.shape_cast %104 : vector<8xf32> to vector<8x1xf32>
      %c0_45 = arith.constant 0 : index
      %c0_46 = arith.constant 0 : index
      %106 = vector.load %arg12[%c0_45, %c0_46] : memref<1x1xf32, #tpu.memory_space<vmem>>, vector<1x1xf32>
      %107 = vector.broadcast %106 : vector<1x1xf32> to vector<8x1xf32>
      %108 = arith.addf %105, %107 : vector<8x1xf32>
      %109 = arith.negf %108 : vector<8x1xf32>
      %110 = math.exp %109 : vector<8x1xf32>
      %cst_47 = arith.constant 1.000000e+00 : f32
      %111 = vector.broadcast %cst_47 : f32 to vector<8x1xf32>
      %112 = arith.addf %111, %110 : vector<8x1xf32>
      %113 = arith.divf %111, %112 : vector<8x1xf32>
      %c0_48 = arith.constant 0 : index
      %c0_49 = arith.constant 0 : index
      %114 = vector.load %arg13[%c0_48, %c0_49] : memref<8x1xf32, #tpu.memory_space<vmem>>, vector<8x1xf32>
      tpu.vector_store %arg13[%c0_48, %c0_49], %113 {strides = array<i32>} : memref<8x1xf32, #tpu.memory_space<vmem>>, vector<8x1xf32>,
    } else {
    }
    return
  }
  func.func @transform_0(%arg0: i32, %arg1: i32) -> (i32, i32, i32) {
    %c0_i32 = arith.constant 0 : i32
    %c0_i32_0 = arith.constant 0 : i32
    return %arg0, %arg1, %c0_i32 : i32, i32, i32
  }
  func.func @transform_1(%arg0: i32, %arg1: i32) -> (i32, i32) {
    %c0_i32 = arith.constant 0 : i32
    %c0_i32_0 = arith.constant 0 : i32
    %c0_i32_1 = arith.constant 0 : i32
    return %c0_i32, %c0_i32_0 : i32, i32
  }
  func.func @transform_2(%arg0: i32, %arg1: i32) -> (i32, i32) {
    %c0_i32 = arith.constant 0 : i32
    %c0_i32_0 = arith.constant 0 : i32
    %c0_i32_1 = arith.constant 0 : i32
    return %c0_i32, %c0_i32_0 : i32, i32
  }
  func.func @transform_3(%arg0: i32, %arg1: i32) -> (i32, i32) {
    %c0_i32 = arith.constant 0 : i32
    %c0_i32_0 = arith.constant 0 : i32
    %c0_i32_1 = arith.constant 0 : i32
    return %c0_i32, %c0_i32_0 : i32, i32
  }
  func.func @transform_4(%arg0: i32, %arg1: i32) -> (i32, i32) {
    %c0_i32 = arith.constant 0 : i32
    %c0_i32_0 = arith.constant 0 : i32
    %c0_i32_1 = arith.constant 0 : i32
    return %c0_i32, %c0_i32_0 : i32, i32
  }
  func.func @transform_5(%arg0: i32, %arg1: i32) -> (i32, i32) {
    %c0_i32 = arith.constant 0 : i32
    %c0_i32_0 = arith.constant 0 : i32
    %c0_i32_1 = arith.constant 0 : i32
    return %c0_i32, %c0_i32_0 : i32, i32
  }
  func.func @transform_6(%arg0: i32, %arg1: i32) -> (i32, i32) {
    %c0_i32 = arith.constant 0 : i32
    %c0_i32_0 = arith.constant 0 : i32
    %c0_i32_1 = arith.constant 0 : i32
    return %c0_i32, %c0_i32_0 : i32, i32
  }
  func.func @transform_7(%arg0: i32, %arg1: i32) -> (i32, i32) {
    %c0_i32 = arith.constant 0 : i32
    %c0_i32_0 = arith.constant 0 : i32
    %c0_i32_1 = arith.constant 0 : i32
    return %c0_i32, %c0_i32_0 : i32, i32
  }
  func.func @transform_8(%arg0: i32, %arg1: i32) -> (i32, i32) {
    %c0_i32 = arith.constant 0 : i32
    %c0_i32_0 = arith.constant 0 : i32
    %c0_i32_1 = arith.constant 0 : i32
    return %c0_i32, %c0_i32_0 : i32, i32
  }
  func.func @transform_9(%arg0: i32, %arg1: i32) -> (i32, i32) {
    %c0_i32 = arith.constant 0 : i32
    %c0_i32_0 = arith.constant 0 : i32
    %c0_i32_1 = arith.constant 0 : i32
    return %c0_i32, %c0_i32_0 : i32, i32
  }
  func.func @transform_10(%arg0: i32, %arg1: i32) -> (i32, i32) {
    %c0_i32 = arith.constant 0 : i32
    %c0_i32_0 = arith.constant 0 : i32
    %c0_i32_1 = arith.constant 0 : i32
    return %c0_i32, %c0_i32_0 : i32, i32
  }
  func.func @transform_11(%arg0: i32, %arg1: i32) -> (i32, i32) {
    %c0_i32 = arith.constant 0 : i32
    %c0_i32_0 = arith.constant 0 : i32
    %c0_i32_1 = arith.constant 0 : i32
    return %c0_i32, %c0_i32_0 : i32, i32
  }
}

</mosaic_0001>

<llo_original>
// kernel: tpu_custom_call.1
$region0: #{tpu_custom_call.1}
  #allocation0 [shape = 'u32[]', space=smem, size = 0x4, offset = 0x4, fixed_abs, tag = 'smem constant byte address 0x4 - core index']
  #allocation1 [shape = 'u32[72,128]{1,0:T(1,128)}', space=vmem, size = 0x9000, scoped, tag = 'internal scratch']
  #allocation2 [shape = 'f32[16,64]{1,0:T(8,128)}', space=vmem, size = 0x2000, scoped, tag = 'scratch operand']
  #allocation3 [shape = 'f32[1,1]{1,0:T(1,128)S(1)}', space=vmem, size = 0x200, scoped, tag = 'scoped memory for tpu_custom_call.1']
  %s0 = inlined_call_operand.vmem [shape: f32[2,8,1024], index: 0, kind: input, shape index: {}]
  %s1 = inlined_call_operand.vmem [shape: f32[1024,64], index: 1, kind: input, shape index: {}]
  %s2 = inlined_call_operand.vmem [shape: f32[1,64], index: 2, kind: input, shape index: {}]
  %s3 = inlined_call_operand.vmem [shape: f32[1,64], index: 3, kind: input, shape index: {}]
  %s4 = inlined_call_operand.vmem [shape: f32[1,64], index: 4, kind: input, shape index: {}]
  %s5 = inlined_call_operand.vmem [shape: f32[192,64], index: 5, kind: input, shape index: {}]
  %s6 = inlined_call_operand.vmem [shape: f32[1,64], index: 6, kind: input, shape index: {}]
  %s7 = inlined_call_operand.vmem [shape: f32[1,64], index: 7, kind: input, shape index: {}]
  %s8 = inlined_call_operand.vmem [shape: f32[1,64], index: 8, kind: input, shape index: {}]
  %s9 = inlined_call_operand.vmem [shape: f32[1,64], index: 9, kind: input, shape index: {}]
  %s10 = inlined_call_operand.<no memory space> [shape: f32[1,1], index: 10, kind: input, shape index: {}]
  %s11 = inlined_call_operand.vmem [shape: f32[8,1], index: 11, kind: output, shape index: {}]
  %s12 = sld [smem:[#allocation0]]
  $region81: #{tpu_custom_call.1} parent=0
    _
  %s14 = ssub.s32 1, %s12
  %s15 = scalar_select 0, %s14, %s12
  %v16 = vstv %s10
  %17 = vst [vmem:[#allocation3] sm:$0x1] %v16
  loop: start=0, step=1, limit=4
  $region2: #{tpu_custom_call.1} parent=0 // loop_pre_header
    _
  $region3: #{tpu_custom_call.1} parent=0 // loop_header
    %s19 = sphi 0, %s23
    %p20 = scmp.ge.s32.totalorder %s19, 4
    %s26 = sphi 0, %s38
    %s27 = sphi 0, %s34
    %s28 = sphi 0, %s26
    %s29 = sphi 0, %s27
    %s30 = sphi 0, %s28
    %s31 = sphi 0, %s29
    %s43 = sphi 0, %s45
    %s46 = sphi 0, %s43
    %s47 = sphi 0, %s46
    %s63 = sphi 0, %s47
    %s67 = sphi 0, %s67
    %s69 = sphi 0, %s67
    %s70 = sphi 0, %s69
    %s84 = sphi 0, %s70
    %s88 = sphi 0, %s88
    %s90 = sphi 0, %s88
    %s91 = sphi 0, %s90
    %s105 = sphi 0, %s91
    %s109 = sphi 0, %s109
    %s111 = sphi 0, %s109
    %s112 = sphi 0, %s111
    %s126 = sphi 0, %s112
    %s130 = sphi 0, %s130
    %s132 = sphi 0, %s130
    %s133 = sphi 0, %s132
    %s147 = sphi 0, %s133
    %s151 = sphi 0, %s151
    %s153 = sphi 0, %s151
    %s154 = sphi 0, %s153
    %s168 = sphi 0, %s154
    %s172 = sphi 0, %s172
    %s174 = sphi 0, %s172
    %s175 = sphi 0, %s174
    %s189 = sphi 0, %s175
    %s193 = sphi 0, %s193
    %s195 = sphi 0, %s193
    %s196 = sphi 0, %s195
    %s210 = sphi 0, %s196
    %s214 = sphi 0, %s214
    %s216 = sphi 0, %s214
    %s217 = sphi 0, %s216
    %s231 = sphi 0, %s217
    %s235 = sphi 0, %s235
    %s237 = sphi 0, %s235
    %s238 = sphi 0, %s237
    %s252 = sphi 0, %s238
    %s256 = sphi 0, %s256
    %s258 = sphi 0, %s256
    %s259 = sphi 0, %s258
    %s273 = sphi 0, %s259
    %s277 = sphi 0, %s277
    %s279 = sphi 0, %s277
    %s280 = sphi 0, %s279
    %s294 = sphi 0, %s280
  $region4: #{tpu_custom_call.1} parent=0 // loop_header_branch
    %22 = sbr.rel (%p20) target = $region8
  $region5: #{tpu_custom_call.1} parent=0 // loop_body
    %s24 = ssub.s32 %s19, 1
    %s25 = ssub.s32 %s19, 2
    %s32 = sadd.s32 1, %s27
    %p33 = scmp.ge.s32.totalorder %s32, 1
    %s34 = scalar_select %p33, 0, %s32
    %s35 = sadd.s32 1, %s26
    %s36 = scalar_select %p33, %s35, %s26
    %p37 = scmp.ge.s32.totalorder %s36, 2
    %s38 = scalar_select %p37, 0, %s36
    %s39 = ssub.s32 %s26, %s38
    %s40 = ssub.s32 %s27, %s34
    %s41 = sor.u32 %s39, %s40
    %p42 = scmp.eq.s32.totalorder %s41, 0
    %s44 = sadd.s32 %s43, 1
    %s45 = scalar_select %p42, %s43, %s44
    %p48 = pneg %p42
    %p49 = scmp.eq.s32.totalorder %s19, 1
    %p50 = por %p48, %p49
    %p51 = scmp.ne.s32.totalorder %s43, %s46
    %p52 = scmp.eq.s32.totalorder %s19, 0
    %p53 = por %p51, %p52
    %p54 = scmp.ne.s32.totalorder %s43, %s46
    %p55 = scmp.eq.s32.totalorder %s24, 1
    %p56 = por %p54, %p55
    %p57 = scmp.ne.s32.totalorder %s46, %s47
    %p58 = scmp.eq.s32.totalorder %s24, 0
    %p59 = por %p57, %p58
    %p60 = scmp.ne.s32.totalorder %s46, %s47
    %p61 = scmp.eq.s32.totalorder %s25, 1
    %p62 = por %p60, %p61
    %p64 = scmp.ne.s32.totalorder %s47, %s63
    %p65 = scmp.eq.s32.totalorder %s25, 0
    %p66 = por %p64, %p65
    %s68 = sadd.s32 %s67, 1
    %p71 = scmp.eq.s32.totalorder %s19, 1
    %p72 = scmp.ne.s32.totalorder %s67, %s69
    %p73 = scmp.eq.s32.totalorder %s19, 0
    %p74 = por %p72, %p73
    %p75 = scmp.ne.s32.totalorder %s67, %s69
    %p76 = scmp.eq.s32.totalorder %s24, 1
    %p77 = por %p75, %p76
    %p78 = scmp.ne.s32.totalorder %s69, %s70
    %p79 = scmp.eq.s32.totalorder %s24, 0
    %p80 = por %p78, %p79
    %p81 = scmp.ne.s32.totalorder %s69, %s70
    %p82 = scmp.eq.s32.totalorder %s25, 1
    %p83 = por %p81, %p82
    %p85 = scmp.ne.s32.totalorder %s70, %s84
    %p86 = scmp.eq.s32.totalorder %s25, 0
    %p87 = por %p85, %p86
    %s89 = sadd.s32 %s88, 1
    %p92 = scmp.eq.s32.totalorder %s19, 1
    %p93 = scmp.ne.s32.totalorder %s88, %s90
    %p94 = scmp.eq.s32.totalorder %s19, 0
    %p95 = por %p93, %p94
    %p96 = scmp.ne.s32.totalorder %s88, %s90
    %p97 = scmp.eq.s32.totalorder %s24, 1
    %p98 = por %p96, %p97
    %p99 = scmp.ne.s32.totalorder %s90, %s91
    %p100 = scmp.eq.s32.totalorder %s24, 0
    %p101 = por %p99, %p100
    %p102 = scmp.ne.s32.totalorder %s90, %s91
    %p103 = scmp.eq.s32.totalorder %s25, 1
    %p104 = por %p102, %p103
    %p106 = scmp.ne.s32.totalorder %s91, %s105
    %p107 = scmp.eq.s32.totalorder %s25, 0
    %p108 = por %p106, %p107
    %s110 = sadd.s32 %s109, 1
    %p113 = scmp.eq.s32.totalorder %s19, 1
    %p114 = scmp.ne.s32.totalorder %s109, %s111
    %p115 = scmp.eq.s32.totalorder %s19, 0
    %p116 = por %p114, %p115
    %p117 = scmp.ne.s32.totalorder %s109, %s111
    %p118 = scmp.eq.s32.totalorder %s24, 1
    %p119 = por %p117, %p118
    %p120 = scmp.ne.s32.totalorder %s111, %s112
    %p121 = scmp.eq.s32.totalorder %s24, 0
    %p122 = por %p120, %p121
    %p123 = scmp.ne.s32.totalorder %s111, %s112
    %p124 = scmp.eq.s32.totalorder %s25, 1
    %p125 = por %p123, %p124
    %p127 = scmp.ne.s32.totalorder %s112, %s126
    %p128 = scmp.eq.s32.totalorder %s25, 0
    %p129 = por %p127, %p128
    %s131 = sadd.s32 %s130, 1
    %p134 = scmp.eq.s32.totalorder %s19, 1
    %p135 = scmp.ne.s32.totalorder %s130, %s132
    %p136 = scmp.eq.s32.totalorder %s19, 0
    %p137 = por %p135, %p136
    %p138 = scmp.ne.s32.totalorder %s130, %s132
    %p139 = scmp.eq.s32.totalorder %s24, 1
    %p140 = por %p138, %p139
    %p141 = scmp.ne.s32.totalorder %s132, %s133
    %p142 = scmp.eq.s32.totalorder %s24, 0
    %p143 = por %p141, %p142
    %p144 = scmp.ne.s32.totalorder %s132, %s133
    %p145 = scmp.eq.s32.totalorder %s25, 1
    %p146 = por %p144, %p145
    %p148 = scmp.ne.s32.totalorder %s133, %s147
    %p149 = scmp.eq.s32.totalorder %s25, 0
    %p150 = por %p148, %p149
    %s152 = sadd.s32 %s151, 1
    %p155 = scmp.eq.s32.totalorder %s19, 1
    %p156 = scmp.ne.s32.totalorder %s151, %s153
    %p157 = scmp.eq.s32.totalorder %s19, 0
    %p158 = por %p156, %p157
    %p159 = scmp.ne.s32.totalorder %s151, %s153
    %p160 = scmp.eq.s32.totalorder %s24, 1
    %p161 = por %p159, %p160
    %p162 = scmp.ne.s32.totalorder %s153, %s154
    %p163 = scmp.eq.s32.totalorder %s24, 0
    %p164 = por %p162, %p163
    %p165 = scmp.ne.s32.totalorder %s153, %s154
    %p166 = scmp.eq.s32.totalorder %s25, 1
    %p167 = por %p165, %p166
    %p169 = scmp.ne.s32.totalorder %s154, %s168
    %p170 = scmp.eq.s32.totalorder %s25, 0
    %p171 = por %p169, %p170
    %s173 = sadd.s32 %s172, 1
    %p176 = scmp.eq.s32.totalorder %s19, 1
    %p177 = scmp.ne.s32.totalorder %s172, %s174
    %p178 = scmp.eq.s32.totalorder %s19, 0
    %p179 = por %p177, %p178
    %p180 = scmp.ne.s32.totalorder %s172, %s174
    %p181 = scmp.eq.s32.totalorder %s24, 1
    %p182 = por %p180, %p181
    %p183 = scmp.ne.s32.totalorder %s174, %s175
    %p184 = scmp.eq.s32.totalorder %s24, 0
    %p185 = por %p183, %p184
    %p186 = scmp.ne.s32.totalorder %s174, %s175
    %p187 = scmp.eq.s32.totalorder %s25, 1
    %p188 = por %p186, %p187
    %p190 = scmp.ne.s32.totalorder %s175, %s189
    %p191 = scmp.eq.s32.totalorder %s25, 0
    %p192 = por %p190, %p191
    %s194 = sadd.s32 %s193, 1
    %p197 = scmp.eq.s32.totalorder %s19, 1
    %p198 = scmp.ne.s32.totalorder %s193, %s195
    %p199 = scmp.eq.s32.totalorder %s19, 0
    %p200 = por %p198, %p199
    %p201 = scmp.ne.s32.totalorder %s193, %s195
    %p202 = scmp.eq.s32.totalorder %s24, 1
    %p203 = por %p201, %p202
    %p204 = scmp.ne.s32.totalorder %s195, %s196
    %p205 = scmp.eq.s32.totalorder %s24, 0
    %p206 = por %p204, %p205
    %p207 = scmp.ne.s32.totalorder %s195, %s196
    %p208 = scmp.eq.s32.totalorder %s25, 1
    %p209 = por %p207, %p208
    %p211 = scmp.ne.s32.totalorder %s196, %s210
    %p212 = scmp.eq.s32.totalorder %s25, 0
    %p213 = por %p211, %p212
    %s215 = sadd.s32 %s214, 1
    %p218 = scmp.eq.s32.totalorder %s19, 1
    %p219 = scmp.ne.s32.totalorder %s214, %s216
    %p220 = scmp.eq.s32.totalorder %s19, 0
    %p221 = por %p219, %p220
    %p222 = scmp.ne.s32.totalorder %s214, %s216
    %p223 = scmp.eq.s32.totalorder %s24, 1
    %p224 = por %p222, %p223
    %p225 = scmp.ne.s32.totalorder %s216, %s217
    %p226 = scmp.eq.s32.totalorder %s24, 0
    %p227 = por %p225, %p226
    %p228 = scmp.ne.s32.totalorder %s216, %s217
    %p229 = scmp.eq.s32.totalorder %s25, 1
    %p230 = por %p228, %p229
    %p232 = scmp.ne.s32.totalorder %s217, %s231
    %p233 = scmp.eq.s32.totalorder %s25, 0
    %p234 = por %p232, %p233
    %s236 = sadd.s32 %s235, 1
    %p239 = scmp.eq.s32.totalorder %s19, 1
    %p240 = scmp.ne.s32.totalorder %s235, %s237
    %p241 = scmp.eq.s32.totalorder %s19, 0
    %p242 = por %p240, %p241
    %p243 = scmp.ne.s32.totalorder %s235, %s237
    %p244 = scmp.eq.s32.totalorder %s24, 1
    %p245 = por %p243, %p244
    %p246 = scmp.ne.s32.totalorder %s237, %s238
    %p247 = scmp.eq.s32.totalorder %s24, 0
    %p248 = por %p246, %p247
    %p249 = scmp.ne.s32.totalorder %s237, %s238
    %p250 = scmp.eq.s32.totalorder %s25, 1
    %p251 = por %p249, %p250
    %p253 = scmp.ne.s32.totalorder %s238, %s252
    %p254 = scmp.eq.s32.totalorder %s25, 0
    %p255 = por %p253, %p254
    %s257 = sadd.s32 %s256, 1
    %p260 = scmp.eq.s32.totalorder %s19, 1
    %p261 = scmp.ne.s32.totalorder %s256, %s258
    %p262 = scmp.eq.s32.totalorder %s19, 0
    %p263 = por %p261, %p262
    %p264 = scmp.ne.s32.totalorder %s256, %s258
    %p265 = scmp.eq.s32.totalorder %s24, 1
    %p266 = por %p264, %p265
    %p267 = scmp.ne.s32.totalorder %s258, %s259
    %p268 = scmp.eq.s32.totalorder %s24, 0
    %p269 = por %p267, %p268
    %p270 = scmp.ne.s32.totalorder %s258, %s259
    %p271 = scmp.eq.s32.totalorder %s25, 1
    %p272 = por %p270, %p271
    %p274 = scmp.ne.s32.totalorder %s259, %s273
    %p275 = scmp.eq.s32.totalorder %s25, 0
    %p276 = por %p274, %p275
    %s278 = sadd.s32 %s277, 1
    %p281 = scmp.eq.s32.totalorder %s19, 1
    %p282 = scmp.ne.s32.totalorder %s277, %s279
    %p283 = scmp.eq.s32.totalorder %s19, 0
    %p284 = por %p282, %p283
    %p285 = scmp.ne.s32.totalorder %s277, %s279
    %p286 = scmp.eq.s32.totalorder %s24, 1
    %p287 = por %p285, %p286
    %p288 = scmp.ne.s32.totalorder %s279, %s280
    %p289 = scmp.eq.s32.totalorder %s24, 0
    %p290 = por %p288, %p289
    %p291 = scmp.ne.s32.totalorder %s279, %s280
    %p292 = scmp.eq.s32.totalorder %s25, 1
    %p293 = por %p291, %p292
    %p295 = scmp.ne.s32.totalorder %s280, %s294
    %p296 = scmp.eq.s32.totalorder %s25, 0
    %p297 = por %p295, %p296
    %p298 = scmp.le.s32.totalorder 1, %s19
    %p299 = scmp.lt.s32.totalorder %s19, 3
    %p300 = pnand %p298, %p299
    %p301 = pneg %p300
    // Predicated region
    $region9: #{tpu_custom_call.1} parent=5 // pred_check
      _
    $region10: #{tpu_custom_call.1} parent=5 // pred_check_branch
      %303 = sbr.rel (%p300) target = $region12
    $region11: #{tpu_custom_call.1} parent=5 // pred_region
      %s304 = ssub.s32 %s19, 1
      // Predicated region
      $region13: #{tpu_custom_call.1} parent=11 // pred_check
        %p305 = pneg %p80
      $region14: #{tpu_custom_call.1} parent=11 // pred_check_branch
        %307 = sbr.rel (%p305) target = $region16
      $region15: #{tpu_custom_call.1} parent=11 // pred_region
        _
      $region16: #{tpu_custom_call.1} parent=11 // pred_fallthru
        _
      // Predicated region
      $region17: #{tpu_custom_call.1} parent=11 // pred_check
        %p308 = pneg %p101
      $region18: #{tpu_custom_call.1} parent=11 // pred_check_branch
        %310 = sbr.rel (%p308) target = $region20
      $region19: #{tpu_custom_call.1} parent=11 // pred_region
        _
      $region20: #{tpu_custom_call.1} parent=11 // pred_fallthru
        _
      // Predicated region
      $region21: #{tpu_custom_call.1} parent=11 // pred_check
        %p311 = pneg %p122
      $region22: #{tpu_custom_call.1} parent=11 // pred_check_branch
        %313 = sbr.rel (%p311) target = $region24
      $region23: #{tpu_custom_call.1} parent=11 // pred_region
        _
      $region24: #{tpu_custom_call.1} parent=11 // pred_fallthru
        _
      // Predicated region
      $region25: #{tpu_custom_call.1} parent=11 // pred_check
        %p314 = pneg %p143
      $region26: #{tpu_custom_call.1} parent=11 // pred_check_branch
        %316 = sbr.rel (%p314) target = $region28
      $region27: #{tpu_custom_call.1} parent=11 // pred_region
        _
      $region28: #{tpu_custom_call.1} parent=11 // pred_fallthru
        _
      // Predicated region
      $region29: #{tpu_custom_call.1} parent=11 // pred_check
        %p317 = pneg %p164
      $region30: #{tpu_custom_call.1} parent=11 // pred_check_branch
        %319 = sbr.rel (%p317) target = $region32
      $region31: #{tpu_custom_call.1} parent=11 // pred_region
        _
      $region32: #{tpu_custom_call.1} parent=11 // pred_fallthru
        _
      // Predicated region
      $region33: #{tpu_custom_call.1} parent=11 // pred_check
        %p320 = pneg %p185
      $region34: #{tpu_custom_call.1} parent=11 // pred_check_branch
        %322 = sbr.rel (%p320) target = $region36
      $region35: #{tpu_custom_call.1} parent=11 // pred_region
        _
      $region36: #{tpu_custom_call.1} parent=11 // pred_fallthru
        _
      // Predicated region
      $region37: #{tpu_custom_call.1} parent=11 // pred_check
        %p323 = pneg %p206
      $region38: #{tpu_custom_call.1} parent=11 // pred_check_branch
        %325 = sbr.rel (%p323) target = $region40
      $region39: #{tpu_custom_call.1} parent=11 // pred_region
        _
      $region40: #{tpu_custom_call.1} parent=11 // pred_fallthru
        _
      // Predicated region
      $region41: #{tpu_custom_call.1} parent=11 // pred_check
        %p326 = pneg %p227
      $region42: #{tpu_custom_call.1} parent=11 // pred_check_branch
        %328 = sbr.rel (%p326) target = $region44
      $region43: #{tpu_custom_call.1} parent=11 // pred_region
        _
      $region44: #{tpu_custom_call.1} parent=11 // pred_fallthru
        _
      // Predicated region
      $region45: #{tpu_custom_call.1} parent=11 // pred_check
        %p329 = pneg %p248
      $region46: #{tpu_custom_call.1} parent=11 // pred_check_branch
        %331 = sbr.rel (%p329) target = $region48
      $region47: #{tpu_custom_call.1} parent=11 // pred_region
        _
      $region48: #{tpu_custom_call.1} parent=11 // pred_fallthru
        _
      // Predicated region
      $region49: #{tpu_custom_call.1} parent=11 // pred_check
        %p332 = pneg %p269
      $region50: #{tpu_custom_call.1} parent=11 // pred_check_branch
        %334 = sbr.rel (%p332) target = $region52
      $region51: #{tpu_custom_call.1} parent=11 // pred_region
        _
      $region52: #{tpu_custom_call.1} parent=11 // pred_fallthru
        _
    $region12: #{tpu_custom_call.1} parent=5 // pred_fallthru
      _
    %p335 = scmp.lt.s32.totalorder %s19, 2
    // Predicated region
    $region53: #{tpu_custom_call.1} parent=5 // pred_check
      %p336 = pneg %p335
    $region54: #{tpu_custom_call.1} parent=5 // pred_check_branch
      %338 = sbr.rel (%p336) target = $region56
    $region55: #{tpu_custom_call.1} parent=5 // pred_region
      // Predicated region
      $region57: #{tpu_custom_call.1} parent=55 // pred_check
        %p339 = pneg %p53
      $region58: #{tpu_custom_call.1} parent=55 // pred_check_branch
        %341 = sbr.rel (%p339) target = $region60
      $region59: #{tpu_custom_call.1} parent=55 // pred_region
        %p342 = scmp.lt.s32.totalorder %s26, 1
        %s343 = scalar_select %p342, %s26, 1
        %p344 = scmp.lt.s32.totalorder %s27, 0
        %s345 = scalar_select %p344, %s27, 0
        %s346 = smul.addr %s345, 8
        %s347 = smul.addr %s343, 8
        %s348 = sadd.s32 %s346, %s347
        %s349 = smul.addr %s348, 8
        %s350 = scalar_lea.vmem %s0, %s349
      $region60: #{tpu_custom_call.1} parent=55 // pred_fallthru
        _
    $region56: #{tpu_custom_call.1} parent=5 // pred_fallthru
      _
    %p351 = scmp.le.s32.totalorder 1, %s19
    %p352 = scmp.lt.s32.totalorder %s19, 3
    %p353 = pnand %p351, %p352
    %p354 = pneg %p353
    // Predicated region
    $region61: #{tpu_custom_call.1} parent=5 // pred_check
      _
    $region62: #{tpu_custom_call.1} parent=5 // pred_check_branch
      %356 = sbr.rel (%p353) target = $region64
    $region63: #{tpu_custom_call.1} parent=5 // pred_region
      %s357 = ssub.s32 %s19, 1
      %p358 = scmp.lt.s32.totalorder %s28, 1
      %s359 = scalar_select %p358, %s28, 1
      %p360 = scmp.lt.s32.totalorder %s29, 0
      %s361 = scalar_select %p360, %s29, 0
      %s362 = smul.addr %s361, 8
      %s363 = smul.addr %s359, 8
      %s364 = sadd.s32 %s362, %s363
      %s365 = smul.addr %s364, 8
      %s366 = scalar_lea.vmem %s0, %s365
      %p367 = pneg %p59
      %p368 = pneg %p56
      %p369 = pneg %p80
      %p370 = pneg %p77
      %p371 = pneg %p101
      %p372 = pneg %p98
      %p373 = pneg %p122
      %p374 = pneg %p119
      %p375 = pneg %p143
      %p376 = pneg %p140
      %p377 = pneg %p164
      %p378 = pneg %p161
      %p379 = pneg %p185
      %p380 = pneg %p182
      %p381 = pneg %p206
      %p382 = pneg %p203
      %p383 = pneg %p227
      %p384 = pneg %p224
      %p385 = pneg %p248
      %p386 = pneg %p245
      %p387 = pneg %p269
      %p388 = pneg %p266
      %p389 = pneg %p290
      %p390 = pneg %p287
      %p391 = scmp.lt.s32.totalorder %s28, 1
      %s392 = scalar_select %p391, %s28, 1
      %p393 = scmp.lt.s32.totalorder %s29, 0
      %s394 = scalar_select %p393, %s29, 0
      %s395 = smul.addr %s394, 8
      %s396 = smul.addr %s392, 8
      %s397 = sadd.s32 %s395, %s396
      %s398 = smul.addr %s397, 8
      %s399 = scalar_lea.vmem %s0, %s398
      %v400 = vld [vmem:[%s399] sm:$0xff]
      %v401 = vld [vmem:[%s399 + $0x8] sm:$0xff]
      %v402 = vld [vmem:[%s399 + $0x10] sm:$0xff]
      %v403 = vld [vmem:[%s399 + $0x18] sm:$0xff]
      %v404 = vld [vmem:[%s399 + $0x20] sm:$0xff]
      %v405 = vld [vmem:[%s399 + $0x28] sm:$0xff]
      %v406 = vld [vmem:[%s399 + $0x30] sm:$0xff]
      %v407 = vld [vmem:[%s399 + $0x38] sm:$0xff]
      %v408 = vld [vmem:[%s1] sm:$0xff]
      %v409 = vld [vmem:[%s1 + $0x8] sm:$0xff]
      %v410 = vld [vmem:[%s1 + $0x10] sm:$0xff]
      %v411 = vld [vmem:[%s1 + $0x18] sm:$0xff]
      %v412 = vld [vmem:[%s1 + $0x20] sm:$0xff]
      %v413 = vld [vmem:[%s1 + $0x28] sm:$0xff]
      %v414 = vld [vmem:[%s1 + $0x30] sm:$0xff]
      %v415 = vld [vmem:[%s1 + $0x38] sm:$0xff]
      %v416 = vld [vmem:[%s1 + $0x40] sm:$0xff]
      %v417 = vld [vmem:[%s1 + $0x48] sm:$0xff]
      %v418 = vld [vmem:[%s1 + $0x50] sm:$0xff]
      %v419 = vld [vmem:[%s1 + $0x58] sm:$0xff]
      %v420 = vld [vmem:[%s1 + $0x60] sm:$0xff]
      %v421 = vld [vmem:[%s1 + $0x68] sm:$0xff]
      %v422 = vld [vmem:[%s1 + $0x70] sm:$0xff]
      %v423 = vld [vmem:[%s1 + $0x78] sm:$0xff]
      %v424 = vld [vmem:[%s1 + $0x80] sm:$0xff]
      %v425 = vld [vmem:[%s1 + $0x88] sm:$0xff]
      %v426 = vld [vmem:[%s1 + $0x90] sm:$0xff]
      %v427 = vld [vmem:[%s1 + $0x98] sm:$0xff]
      %v428 = vld [vmem:[%s1 + $0xa0] sm:$0xff]
      %v429 = vld [vmem:[%s1 + $0xa8] sm:$0xff]
      %v430 = vld [vmem:[%s1 + $0xb0] sm:$0xff]
      %v431 = vld [vmem:[%s1 + $0xb8] sm:$0xff]
      %v432 = vld [vmem:[%s1 + $0xc0] sm:$0xff]
      %v433 = vld [vmem:[%s1 + $0xc8] sm:$0xff]
      %v434 = vld [vmem:[%s1 + $0xd0] sm:$0xff]
      %v435 = vld [vmem:[%s1 + $0xd8] sm:$0xff]
      %v436 = vld [vmem:[%s1 + $0xe0] sm:$0xff]
      %v437 = vld [vmem:[%s1 + $0xe8] sm:$0xff]
      %v438 = vld [vmem:[%s1 + $0xf0] sm:$0xff]
      %v439 = vld [vmem:[%s1 + $0xf8] sm:$0xff]
      %v440 = vld [vmem:[%s1 + $0x100] sm:$0xff]
      %v441 = vld [vmem:[%s1 + $0x108] sm:$0xff]
      %v442 = vld [vmem:[%s1 + $0x110] sm:$0xff]
      %v443 = vld [vmem:[%s1 + $0x118] sm:$0xff]
      %v444 = vld [vmem:[%s1 + $0x120] sm:$0xff]
      %v445 = vld [vmem:[%s1 + $0x128] sm:$0xff]
      %v446 = vld [vmem:[%s1 + $0x130] sm:$0xff]
      %v447 = vld [vmem:[%s1 + $0x138] sm:$0xff]
      %v448 = vld [vmem:[%s1 + $0x140] sm:$0xff]
      %v449 = vld [vmem:[%s1 + $0x148] sm:$0xff]
      %v450 = vld [vmem:[%s1 + $0x150] sm:$0xff]
      %v451 = vld [vmem:[%s1 + $0x158] sm:$0xff]
      %v452 = vld [vmem:[%s1 + $0x160] sm:$0xff]
      %v453 = vld [vmem:[%s1 + $0x168] sm:$0xff]
      %v454 = vld [vmem:[%s1 + $0x170] sm:$0xff]
      %v455 = vld [vmem:[%s1 + $0x178] sm:$0xff]
      %v456 = vld [vmem:[%s1 + $0x180] sm:$0xff]
      %v457 = vld [vmem:[%s1 + $0x188] sm:$0xff]
      %v458 = vld [vmem:[%s1 + $0x190] sm:$0xff]
      %v459 = vld [vmem:[%s1 + $0x198] sm:$0xff]
      %v460 = vld [vmem:[%s1 + $0x1a0] sm:$0xff]
      %v461 = vld [vmem:[%s1 + $0x1a8] sm:$0xff]
      %v462 = vld [vmem:[%s1 + $0x1b0] sm:$0xff]
      %v463 = vld [vmem:[%s1 + $0x1b8] sm:$0xff]
      %v464 = vld [vmem:[%s1 + $0x1c0] sm:$0xff]
      %v465 = vld [vmem:[%s1 + $0x1c8] sm:$0xff]
      %v466 = vld [vmem:[%s1 + $0x1d0] sm:$0xff]
      %v467 = vld [vmem:[%s1 + $0x1d8] sm:$0xff]
      %v468 = vld [vmem:[%s1 + $0x1e0] sm:$0xff]
      %v469 = vld [vmem:[%s1 + $0x1e8] sm:$0xff]
      %v470 = vld [vmem:[%s1 + $0x1f0] sm:$0xff]
      %v471 = vld [vmem:[%s1 + $0x1f8] sm:$0xff]
      %v472 = vld [vmem:[%s1 + $0x200] sm:$0xff]
      %v473 = vld [vmem:[%s1 + $0x208] sm:$0xff]
      %v474 = vld [vmem:[%s1 + $0x210] sm:$0xff]
      %v475 = vld [vmem:[%s1 + $0x218] sm:$0xff]
      %v476 = vld [vmem:[%s1 + $0x220] sm:$0xff]
      %v477 = vld [vmem:[%s1 + $0x228] sm:$0xff]
      %v478 = vld [vmem:[%s1 + $0x230] sm:$0xff]
      %v479 = vld [vmem:[%s1 + $0x238] sm:$0xff]
      %v480 = vld [vmem:[%s1 + $0x240] sm:$0xff]
      %v481 = vld [vmem:[%s1 + $0x248] sm:$0xff]
      %v482 = vld [vmem:[%s1 + $0x250] sm:$0xff]
      %v483 = vld [vmem:[%s1 + $0x258] sm:$0xff]
      %v484 = vld [vmem:[%s1 + $0x260] sm:$0xff]
      %v485 = vld [vmem:[%s1 + $0x268] sm:$0xff]
      %v486 = vld [vmem:[%s1 + $0x270] sm:$0xff]
      %v487 = vld [vmem:[%s1 + $0x278] sm:$0xff]
      %v488 = vld [vmem:[%s1 + $0x280] sm:$0xff]
      %v489 = vld [vmem:[%s1 + $0x288] sm:$0xff]
      %v490 = vld [vmem:[%s1 + $0x290] sm:$0xff]
      %v491 = vld [vmem:[%s1 + $0x298] sm:$0xff]
      %v492 = vld [vmem:[%s1 + $0x2a0] sm:$0xff]
      %v493 = vld [vmem:[%s1 + $0x2a8] sm:$0xff]
      %v494 = vld [vmem:[%s1 + $0x2b0] sm:$0xff]
      %v495 = vld [vmem:[%s1 + $0x2b8] sm:$0xff]
      %v496 = vld [vmem:[%s1 + $0x2c0] sm:$0xff]
      %v497 = vld [vmem:[%s1 + $0x2c8] sm:$0xff]
      %v498 = vld [vmem:[%s1 + $0x2d0] sm:$0xff]
      %v499 = vld [vmem:[%s1 + $0x2d8] sm:$0xff]
      %v500 = vld [vmem:[%s1 + $0x2e0] sm:$0xff]
      %v501 = vld [vmem:[%s1 + $0x2e8] sm:$0xff]
      %v502 = vld [vmem:[%s1 + $0x2f0] sm:$0xff]
      %v503 = vld [vmem:[%s1 + $0x2f8] sm:$0xff]
      %v504 = vld [vmem:[%s1 + $0x300] sm:$0xff]
      %v505 = vld [vmem:[%s1 + $0x308] sm:$0xff]
      %v506 = vld [vmem:[%s1 + $0x310] sm:$0xff]
      %v507 = vld [vmem:[%s1 + $0x318] sm:$0xff]
      %v508 = vld [vmem:[%s1 + $0x320] sm:$0xff]
      %v509 = vld [vmem:[%s1 + $0x328] sm:$0xff]
      %v510 = vld [vmem:[%s1 + $0x330] sm:$0xff]
      %v511 = vld [vmem:[%s1 + $0x338] sm:$0xff]
      %v512 = vld [vmem:[%s1 + $0x340] sm:$0xff]
      %v513 = vld [vmem:[%s1 + $0x348] sm:$0xff]
      %v514 = vld [vmem:[%s1 + $0x350] sm:$0xff]
      %v515 = vld [vmem:[%s1 + $0x358] sm:$0xff]
      %v516 = vld [vmem:[%s1 + $0x360] sm:$0xff]
      %v517 = vld [vmem:[%s1 + $0x368] sm:$0xff]
      %v518 = vld [vmem:[%s1 + $0x370] sm:$0xff]
      %v519 = vld [vmem:[%s1 + $0x378] sm:$0xff]
      %v520 = vld [vmem:[%s1 + $0x380] sm:$0xff]
      %v521 = vld [vmem:[%s1 + $0x388] sm:$0xff]
      %v522 = vld [vmem:[%s1 + $0x390] sm:$0xff]
      %v523 = vld [vmem:[%s1 + $0x398] sm:$0xff]
      %v524 = vld [vmem:[%s1 + $0x3a0] sm:$0xff]
      %v525 = vld [vmem:[%s1 + $0x3a8] sm:$0xff]
      %v526 = vld [vmem:[%s1 + $0x3b0] sm:$0xff]
      %v527 = vld [vmem:[%s1 + $0x3b8] sm:$0xff]
      %v528 = vld [vmem:[%s1 + $0x3c0] sm:$0xff]
      %v529 = vld [vmem:[%s1 + $0x3c8] sm:$0xff]
      %v530 = vld [vmem:[%s1 + $0x3d0] sm:$0xff]
      %v531 = vld [vmem:[%s1 + $0x3d8] sm:$0xff]
      %v532 = vld [vmem:[%s1 + $0x3e0] sm:$0xff]
      %v533 = vld [vmem:[%s1 + $0x3e8] sm:$0xff]
      %v534 = vld [vmem:[%s1 + $0x3f0] sm:$0xff]
      %v535 = vld [vmem:[%s1 + $0x3f8] sm:$0xff]
      %v536 = vld [vmem:[%s2] sm:$0x1]
      %v538 = vperm.slane %v536, 0
      %540 = vmatpush.msra.mxu0 %v423
      %541 = vmatpush.msra.mxu0 %v422
      %542 = vmatpush.msra.mxu0 %v421
      %543 = vmatpush.msra.mxu0 %v420
      %544 = vmatpush.msra.mxu0 %v419
      %545 = vmatpush.msra.mxu0 %v418
      %546 = vmatpush.msra.mxu0 %v417
      %547 = vmatpush.msra.mxu0 %v416
      %548 = vmatpush.msra.mxu0 %v415
      %549 = vmatpush.msra.mxu0 %v414
      %550 = vmatpush.msra.mxu0 %v413
      %551 = vmatpush.msra.mxu0 %v412
      %552 = vmatpush.msra.mxu0 %v411
      %553 = vmatpush.msra.mxu0 %v410
      %554 = vmatpush.msra.mxu0 %v409
      %555 = vmatpush.msra.mxu0 %v408
      %556 = vmatmul.f32.gmra.mxu0 %v400
      %v557 = vpop.f32.mrf.mxu0
      %v558 = vadd.f32 %v538, %v557
      %559 = vdwg.mxu0
      %560 = vmatpush.msra.mxu0 %v439
      %561 = vmatpush.msra.mxu0 %v438
      %562 = vmatpush.msra.mxu0 %v437
      %563 = vmatpush.msra.mxu0 %v436
      %564 = vmatpush.msra.mxu0 %v435
      %565 = vmatpush.msra.mxu0 %v434
      %566 = vmatpush.msra.mxu0 %v433
      %567 = vmatpush.msra.mxu0 %v432
      %568 = vmatpush.msra.mxu0 %v431
      %569 = vmatpush.msra.mxu0 %v430
      %570 = vmatpush.msra.mxu0 %v429
      %571 = vmatpush.msra.mxu0 %v428
      %572 = vmatpush.msra.mxu0 %v427
      %573 = vmatpush.msra.mxu0 %v426
      %574 = vmatpush.msra.mxu0 %v425
      %575 = vmatpush.msra.mxu0 %v424
      %576 = vmatmul.f32.gmra.mxu0 %v401
      %v577 = vpop.f32.mrf.mxu0
      %v578 = vadd.f32 %v558, %v577
      %579 = vdwg.mxu0
      %580 = vmatpush.msra.mxu0 %v455
      %581 = vmatpush.msra.mxu0 %v454
      %582 = vmatpush.msra.mxu0 %v453
      %583 = vmatpush.msra.mxu0 %v452
      %584 = vmatpush.msra.mxu0 %v451
      %585 = vmatpush.msra.mxu0 %v450
      %586 = vmatpush.msra.mxu0 %v449
      %587 = vmatpush.msra.mxu0 %v448
      %588 = vmatpush.msra.mxu0 %v447
      %589 = vmatpush.msra.mxu0 %v446
      %590 = vmatpush.msra.mxu0 %v445
      %591 = vmatpush.msra.mxu0 %v444
      %592 = vmatpush.msra.mxu0 %v443
      %593 = vmatpush.msra.mxu0 %v442
      %594 = vmatpush.msra.mxu0 %v441
      %595 = vmatpush.msra.mxu0 %v440
      %596 = vmatmul.f32.gmra.mxu0 %v402
      %v597 = vpop.f32.mrf.mxu0
      %v598 = vadd.f32 %v578, %v597
      %599 = vdwg.mxu0
      %600 = vmatpush.msra.mxu0 %v471
      %601 = vmatpush.msra.mxu0 %v470
      %602 = vmatpush.msra.mxu0 %v469
      %603 = vmatpush.msra.mxu0 %v468
      %604 = vmatpush.msra.mxu0 %v467
      %605 = vmatpush.msra.mxu0 %v466
      %606 = vmatpush.msra.mxu0 %v465
      %607 = vmatpush.msra.mxu0 %v464
      %608 = vmatpush.msra.mxu0 %v463
      %609 = vmatpush.msra.mxu0 %v462
      %610 = vmatpush.msra.mxu0 %v461
      %611 = vmatpush.msra.mxu0 %v460
      %612 = vmatpush.msra.mxu0 %v459
      %613 = vmatpush.msra.mxu0 %v458
      %614 = vmatpush.msra.mxu0 %v457
      %615 = vmatpush.msra.mxu0 %v456
      %616 = vmatmul.f32.gmra.mxu0 %v403
      %v617 = vpop.f32.mrf.mxu0
      %v618 = vadd.f32 %v598, %v617
      %619 = vdwg.mxu0
      %620 = vmatpush.msra.mxu0 %v487
      %621 = vmatpush.msra.mxu0 %v486
      %622 = vmatpush.msra.mxu0 %v485
      %623 = vmatpush.msra.mxu0 %v484
      %624 = vmatpush.msra.mxu0 %v483
      %625 = vmatpush.msra.mxu0 %v482
      %626 = vmatpush.msra.mxu0 %v481
      %627 = vmatpush.msra.mxu0 %v480
      %628 = vmatpush.msra.mxu0 %v479
      %629 = vmatpush.msra.mxu0 %v478
      %630 = vmatpush.msra.mxu0 %v477
      %631 = vmatpush.msra.mxu0 %v476
      %632 = vmatpush.msra.mxu0 %v475
      %633 = vmatpush.msra.mxu0 %v474
      %634 = vmatpush.msra.mxu0 %v473
      %635 = vmatpush.msra.mxu0 %v472
      %636 = vmatmul.f32.gmra.mxu0 %v404
      %v637 = vpop.f32.mrf.mxu0
      %v638 = vadd.f32 %v618, %v637
      %639 = vdwg.mxu0
      %640 = vmatpush.msra.mxu0 %v503
      %641 = vmatpush.msra.mxu0 %v502
      %642 = vmatpush.msra.mxu0 %v501
      %643 = vmatpush.msra.mxu0 %v500
      %644 = vmatpush.msra.mxu0 %v499
      %645 = vmatpush.msra.mxu0 %v498
      %646 = vmatpush.msra.mxu0 %v497
      %647 = vmatpush.msra.mxu0 %v496
      %648 = vmatpush.msra.mxu0 %v495
      %649 = vmatpush.msra.mxu0 %v494
      %650 = vmatpush.msra.mxu0 %v493
      %651 = vmatpush.msra.mxu0 %v492
      %652 = vmatpush.msra.mxu0 %v491
      %653 = vmatpush.msra.mxu0 %v490
      %654 = vmatpush.msra.mxu0 %v489
      %655 = vmatpush.msra.mxu0 %v488
      %656 = vmatmul.f32.gmra.mxu0 %v405
      %v657 = vpop.f32.mrf.mxu0
      %v658 = vadd.f32 %v638, %v657
      %659 = vdwg.mxu0
      %660 = vmatpush.msra.mxu0 %v519
      %661 = vmatpush.msra.mxu0 %v518
      %662 = vmatpush.msra.mxu0 %v517
      %663 = vmatpush.msra.mxu0 %v516
      %664 = vmatpush.msra.mxu0 %v515
      %665 = vmatpush.msra.mxu0 %v514
      %666 = vmatpush.msra.mxu0 %v513
      %667 = vmatpush.msra.mxu0 %v512
      %668 = vmatpush.msra.mxu0 %v511
      %669 = vmatpush.msra.mxu0 %v510
      %670 = vmatpush.msra.mxu0 %v509
      %671 = vmatpush.msra.mxu0 %v508
      %672 = vmatpush.msra.mxu0 %v507
      %673 = vmatpush.msra.mxu0 %v506
      %674 = vmatpush.msra.mxu0 %v505
      %675 = vmatpush.msra.mxu0 %v504
      %676 = vmatmul.f32.gmra.mxu0 %v406
      %v677 = vpop.f32.mrf.mxu0
      %v678 = vadd.f32 %v658, %v677
      %679 = vdwg.mxu0
      %680 = vmatpush.msra.mxu0 %v535
      %681 = vmatpush.msra.mxu0 %v534
      %682 = vmatpush.msra.mxu0 %v533
      %683 = vmatpush.msra.mxu0 %v532
      %684 = vmatpush.msra.mxu0 %v531
      %685 = vmatpush.msra.mxu0 %v530
      %686 = vmatpush.msra.mxu0 %v529
      %687 = vmatpush.msra.mxu0 %v528
      %688 = vmatpush.msra.mxu0 %v527
      %689 = vmatpush.msra.mxu0 %v526
      %690 = vmatpush.msra.mxu0 %v525
      %691 = vmatpush.msra.mxu0 %v524
      %692 = vmatpush.msra.mxu0 %v523
      %693 = vmatpush.msra.mxu0 %v522
      %694 = vmatpush.msra.mxu0 %v521
      %695 = vmatpush.msra.mxu0 %v520
      %696 = vmatmul.f32.gmra.mxu0 %v407
      %v697 = vpop.f32.mrf.mxu0
      %v698 = vadd.f32 %v678, %v697
      %699 = vdwg.mxu0
      %s700 = smul.u32 %s28, 8
      %s701 = smul.u32 %s29, 8
      %s702 = sadd.s32 %s700, %s701
      %v703 = vmax.f32 %v698, 0.0
      %s704 = scalar_lea.vmem [#allocation2], %s702
      %vm705 = vcmask 523264
      %706 = vst.msk [vmem:[%s704] sm:$0xff] %vm705, %v703
      %p707 = scmp.eq.s32.totalorder %s28, 1
      %p708 = scmp.eq.s32.totalorder %s29, 0
      %p709 = pnand %p707, %p708
      %p710 = pneg %p709
      // Predicated region
      $region65: #{tpu_custom_call.1} parent=63 // pred_check
        _
      $region66: #{tpu_custom_call.1} parent=63 // pred_check_branch
        %712 = sbr.rel (%p709) target = $region68
      $region67: #{tpu_custom_call.1} parent=63 // pred_region
        %v713 = vld [vmem:[%s3] sm:$0x1]
        %v714 = vld [vmem:[%s4] sm:$0x1]
        %v715 = vld [vmem:[#allocation2] sm:$0xff]
        %v716 = vsel %vm705, %v715, 0.0
        %v717 = vrot.slane %v716, 4
        %v718 = vadd.f32 %v716, %v717
        %v719 = vrot.slane %v718, 2
        %v720 = vadd.f32 %v718, %v719
        %v721 = vrot.slane %v720, 1
        %v722 = vadd.f32 %v720, %v721
        %v723 = vrcp.pop 8.0
        %v724 = vmul.f32 8.0, %v723
        %v725 = vsub.f32 1.0, %v724
        %v726 = vmul.f32 %v723, %v725
        %v727 = vadd.f32 %v723, %v726
        %vm728 = vweird.f32 %v723
        %v729 = vsel %vm728, %v723, %v727
        %v730 = vmul.f32 %v722, %v729
        %v731 = vsub.f32 %v715, %v730
        %v732 = vmul.f32 %v731, %v731
        %v733 = vsel %vm705, %v732, 0.0
        %v734 = vrot.slane %v733, 4
        %v735 = vadd.f32 %v733, %v734
        %v736 = vrot.slane %v735, 2
        %v737 = vadd.f32 %v735, %v736
        %v738 = vrot.slane %v737, 1
        %v739 = vadd.f32 %v737, %v738
        %v740 = vmul.f32 %v739, %v729
        %v741 = vadd.f32 %v740, 1e-05
        %v742 = vrsqrt.pop %v741
        %v743 = vmul.f32 %v742, %v741
        %v744 = vmul.f32 %v743, %v742
        %v745 = vmul.f32 0.5, %v744
        %v746 = vsub.f32 1.5, %v745
        %v747 = vmul.f32 %v742, %v746
        %vm748 = vweird.f32 %v741
        %vm749 = vweird.f32 %v742
        %vm750 = vmor %vm748, %vm749
        %v751 = vsel %vm750, %v742, %v747
        %v752 = vmul.f32 %v731, %v751
        %v754 = vperm.slane %v713, 0
        %v756 = vmul.f32 %v752, %v754
        %v758 = vperm.slane %v714, 0
        %v760 = vadd.f32 %v756, %v758
        %v761 = vld [vmem:[#allocation2 + $0x8] sm:$0xff]
        %v762 = vsel %vm705, %v761, 0.0
        %v763 = vrot.slane %v762, 4
        %v764 = vadd.f32 %v762, %v763
        %v765 = vrot.slane %v764, 2
        %v766 = vadd.f32 %v764, %v765
        %v767 = vrot.slane %v766, 1
        %v768 = vadd.f32 %v766, %v767
        %v769 = vmul.f32 %v768, %v729
        %v770 = vsub.f32 %v761, %v769
        %v771 = vmul.f32 %v770, %v770
        %v772 = vsel %vm705, %v771, 0.0
        %v773 = vrot.slane %v772, 4
        %v774 = vadd.f32 %v772, %v773
        %v775 = vrot.slane %v774, 2
        %v776 = vadd.f32 %v774, %v775
        %v777 = vrot.slane %v776, 1
        %v778 = vadd.f32 %v776, %v777
        %v779 = vmul.f32 %v778, %v729
        %v780 = vadd.f32 %v779, 1e-05
        %v781 = vrsqrt.pop %v780
        %v782 = vmul.f32 %v781, %v780
        %v783 = vmul.f32 %v782, %v781
        %v784 = vmul.f32 0.5, %v783
        %v785 = vsub.f32 1.5, %v784
        %v786 = vmul.f32 %v781, %v785
        %vm787 = vweird.f32 %v780
        %vm788 = vweird.f32 %v781
        %vm789 = vmor %vm787, %vm788
        %v790 = vsel %vm789, %v781, %v786
        %v791 = vmul.f32 %v770, %v790
        %v792 = vmul.f32 %v791, %v754
        %v793 = vadd.f32 %v792, %v758
        %v794 = vmul.f32 %v760, %v793
        %796 = vrot.lane.b32.xlu0 %v794, 64
        %v797 = vpop.permute.xlu0 %796
        %v799 = vsel %vm705, %v760, %v797
        %v800 = vld [vmem:[%s5] sm:$0xff]
        %v801 = vld [vmem:[%s5 + $0x8] sm:$0xff]
        %v802 = vld [vmem:[%s5 + $0x10] sm:$0xff]
        %v803 = vld [vmem:[%s5 + $0x18] sm:$0xff]
        %v804 = vld [vmem:[%s5 + $0x20] sm:$0xff]
        %v805 = vld [vmem:[%s5 + $0x28] sm:$0xff]
        %v806 = vld [vmem:[%s5 + $0x30] sm:$0xff]
        %v807 = vld [vmem:[%s5 + $0x38] sm:$0xff]
        %v808 = vld [vmem:[%s5 + $0x40] sm:$0xff]
        %v809 = vld [vmem:[%s5 + $0x48] sm:$0xff]
        %v810 = vld [vmem:[%s5 + $0x50] sm:$0xff]
        %v811 = vld [vmem:[%s5 + $0x58] sm:$0xff]
        %v812 = vld [vmem:[%s5 + $0x60] sm:$0xff]
        %v813 = vld [vmem:[%s5 + $0x68] sm:$0xff]
        %v814 = vld [vmem:[%s5 + $0x70] sm:$0xff]
        %v815 = vld [vmem:[%s5 + $0x78] sm:$0xff]
        %v816 = vld [vmem:[%s5 + $0x80] sm:$0xff]
        %v817 = vld [vmem:[%s5 + $0x88] sm:$0xff]
        %v818 = vld [vmem:[%s5 + $0x90] sm:$0xff]
        %v819 = vld [vmem:[%s5 + $0x98] sm:$0xff]
        %v820 = vld [vmem:[%s5 + $0xa0] sm:$0xff]
        %v821 = vld [vmem:[%s5 + $0xa8] sm:$0xff]
        %v822 = vld [vmem:[%s5 + $0xb0] sm:$0xff]
        %v823 = vld [vmem:[%s5 + $0xb8] sm:$0xff]
        %v824 = vld [vmem:[%s6] sm:$0x1]
        %v826 = vperm.slane %v824, 0
        %v829 = vsel %vm705, %v793, 0
        %831 = vmatpush.msra.mxu0 %v815
        %832 = vmatpush.msra.mxu0 %v814
        %833 = vmatpush.msra.mxu0 %v813
        %834 = vmatpush.msra.mxu0 %v812
        %835 = vmatpush.msra.mxu0 %v811
        %836 = vmatpush.msra.mxu0 %v810
        %837 = vmatpush.msra.mxu0 %v809
        %838 = vmatpush.msra.mxu0 %v808
        %839 = vmatpush.msra.mxu0 %v807
        %840 = vmatpush.msra.mxu0 %v806
        %841 = vmatpush.msra.mxu0 %v805
        %842 = vmatpush.msra.mxu0 %v804
        %843 = vmatpush.msra.mxu0 %v803
        %844 = vmatpush.msra.mxu0 %v802
        %845 = vmatpush.msra.mxu0 %v801
        %846 = vmatpush.msra.mxu0 %v800
        %847 = vmatmul.f32.gmra.mxu0 %v799
        %v848 = vpop.f32.mrf.mxu0
        %v849 = vadd.f32 %v826, %v848
        %850 = vdwg.mxu0
        %851 = vmatpush.msra.mxu0 0.0
        %852 = vmatpush.msra.mxu0 0.0
        %853 = vmatpush.msra.mxu0 0.0
        %854 = vmatpush.msra.mxu0 0.0
        %855 = vmatpush.msra.mxu0 0.0
        %856 = vmatpush.msra.mxu0 0.0
        %857 = vmatpush.msra.mxu0 0.0
        %858 = vmatpush.msra.mxu0 0.0
        %859 = vmatpush.msra.mxu0 %v823
        %860 = vmatpush.msra.mxu0 %v822
        %861 = vmatpush.msra.mxu0 %v821
        %862 = vmatpush.msra.mxu0 %v820
        %863 = vmatpush.msra.mxu0 %v819
        %864 = vmatpush.msra.mxu0 %v818
        %865 = vmatpush.msra.mxu0 %v817
        %866 = vmatpush.msra.mxu0 %v816
        %867 = vmatmul.f32.gmra.mxu0 %v829
        %v868 = vpop.f32.mrf.mxu0
        %v869 = vadd.f32 %v849, %v868
        %870 = vdwg.mxu0
        %v871 = vmax.f32 %v869, 0.0
        %v872 = vld [vmem:[%s7] sm:$0x1]
        %v873 = vld [vmem:[%s8] sm:$0x1]
        %v874 = vsel %vm705, %v871, 0.0
        %v875 = vrot.slane %v874, 4
        %v876 = vadd.f32 %v874, %v875
        %v877 = vrot.slane %v876, 2
        %v878 = vadd.f32 %v876, %v877
        %v879 = vrot.slane %v878, 1
        %v880 = vadd.f32 %v878, %v879
        %v881 = vmul.f32 %v880, %v729
        %v882 = vsub.f32 %v871, %v881
        %v883 = vmul.f32 %v882, %v882
        %v884 = vsel %vm705, %v883, 0.0
        %v885 = vrot.slane %v884, 4
        %v886 = vadd.f32 %v884, %v885
        %v887 = vrot.slane %v886, 2
        %v888 = vadd.f32 %v886, %v887
        %v889 = vrot.slane %v888, 1
        %v890 = vadd.f32 %v888, %v889
        %v891 = vmul.f32 %v890, %v729
        %v892 = vadd.f32 %v891, 1e-05
        %v893 = vrsqrt.pop %v892
        %v894 = vmul.f32 %v893, %v892
        %v895 = vmul.f32 %v894, %v893
        %v896 = vmul.f32 0.5, %v895
        %v897 = vsub.f32 1.5, %v896
        %v898 = vmul.f32 %v893, %v897
        %vm899 = vweird.f32 %v892
        %vm900 = vweird.f32 %v893
        %vm901 = vmor %vm899, %vm900
        %v902 = vsel %vm901, %v893, %v898
        %v903 = vmul.f32 %v882, %v902
        %v905 = vperm.slane %v872, 0
        %v907 = vmul.f32 %v903, %v905
        %v909 = vperm.slane %v873, 0
        %v911 = vadd.f32 %v907, %v909
        %v912 = vld [vmem:[%s9] sm:$0x1]
        %v914 = vperm.slane %v912, 0
        %v916 = vmul.f32 %v911, %v914
        %v917 = vsel %vm705, %v916, 0.0
        %918 = vadd.xlane.f32.xlu0 %v917
        %v919 = vpop.xlane.xlu0 %918
        %v920 = vld [vmem:[#allocation3] sm:$0x1]
        %v922 = vperm.slane %v920, 0
        %v924 = vadd.f32 %v919, %v922
        %v925 = vxor.u32 %v924, 2147483648
        %v926 = vmul.f32 %v925, 1.442695
        %v927 = vpow.pop %v926
        %v928 = vadd.f32 %v927, 1.0
        %v929 = vrcp.pop %v928
        %v930 = vmul.f32 %v928, %v929
        %v931 = vsub.f32 1.0, %v930
        %v932 = vmul.f32 %v929, %v931
        %v933 = vadd.f32 %v929, %v932
        %vm934 = vweird.f32 %v928
        %vm935 = vweird.f32 %v929
        %vm936 = vmor %vm934, %vm935
        %v937 = vsel %vm936, %v929, %v933
        %v938 = vand.u32 2147483647, %v928
        %vm939 = vcmp.eq.f32.partialorder %v938, 8.507059e+37
        %v940 = vand.u32 %v928, 2147483648
        %v941 = vor.u32 1.1754944e-38, %v940
        %v942 = vsel %vm939, %v941, %v937
        %v943 = vmul.f32 1.0, %v942
        %vm944 = vcmask 7168
        %945 = vst.msk [vmem:[%s11] sm:$0xff] %vm944, %v943
      $region68: #{tpu_custom_call.1} parent=63 // pred_fallthru
        _
      // Predicated region
      $region69: #{tpu_custom_call.1} parent=63 // pred_check
        %p946 = pneg %p287
      $region70: #{tpu_custom_call.1} parent=63 // pred_check_branch
        %948 = sbr.rel (%p946) target = $region72
      $region71: #{tpu_custom_call.1} parent=63 // pred_region
        _
      $region72: #{tpu_custom_call.1} parent=63 // pred_fallthru
        _
      // Predicated region
      $region73: #{tpu_custom_call.1} parent=63 // pred_check
        %p949 = pneg %p287
      $region74: #{tpu_custom_call.1} parent=63 // pred_check_branch
        %951 = sbr.rel (%p949) target = $region76
      $region75: #{tpu_custom_call.1} parent=63 // pred_region
        _
      $region76: #{tpu_custom_call.1} parent=63 // pred_fallthru
        _
    $region64: #{tpu_custom_call.1} parent=5 // pred_fallthru
      _
    %p952 = scmp.le.s32.totalorder 2, %s19
    // Predicated region
    $region77: #{tpu_custom_call.1} parent=5 // pred_check
      %p953 = pneg %p952
    $region78: #{tpu_custom_call.1} parent=5 // pred_check_branch
      %955 = sbr.rel (%p953) target = $region80
    $region79: #{tpu_custom_call.1} parent=5 // pred_region
      %s956 = ssub.s32 %s19, 2
    $region80: #{tpu_custom_call.1} parent=5 // pred_fallthru
      _
  $region6: #{tpu_custom_call.1} parent=0 // loop_footer
    %s23 = sadd.s32 1, %s19
  $region7: #{tpu_custom_call.1} parent=0 // loop_footer_branch
    %18 = sbr.rel target = $region3
  $region8: #{tpu_custom_call.1} parent=0 // loop_exit
    _

</llo_original>
